<compile_context>
chip_gen: v6e
topology: v6e:2x2x1
jax: 0.10.0
libtpu: 0.0.40
codegen_flags: <defaults>
</compile_context>

<pallas_src>
import jax
import jax.numpy as jnp
from jax.experimental import pallas as pl
from jax.experimental.pallas import tpu as pltpu


def _silu(v):
    return v * jax.nn.sigmoid(v)


# ------------------------------ Pallas kernel ------------------------------

def _time_mlp_kernel(x_ref, t_ref, w1_ref, b1_ref, w2_ref, b2_ref,
                     eb_ref, ec_ref, o_ref):
    # x_ref : (R=B*C, TILE_N)  lane-dense spatial tile (native dtype)
    # t_ref : (B, Din)         time embedding (f32)
    # w1/b1 : (Din, Hd) / (1, Hd)
    # w2/b2 : (Hd, C)  / (1, C)
    # eb_ref: (R, B)  one-hot over batch   (eb[r, b] = 1 iff b == r // C)
    # ec_ref: (R, C)  one-hot over channel (ec[r, c] = 1 iff c == r %  C)

    # --- tiny time-embedding MLP (recomputed per grid step; negligible) ----
    t = t_ref[...]
    h = jnp.dot(t, w1_ref[...], preferred_element_type=jnp.float32) + b1_ref[...]
    h = _silu(h)                                                      # (B, Hd)
    tp = jnp.dot(h, w2_ref[...], preferred_element_type=jnp.float32) + b2_ref[...]  # (B, C)

    # --- scatter tp[b, c] to row r = b*C + c as a (R, 1) column -------------
    # rep[r, :] = tp[r // C, :]  via one-hot batch selection (pure VPU, no
    # in-kernel reshape or lane<->sublane relayout; B is tiny -> static unroll).
    nb = eb_ref.shape[1]
    rep = eb_ref[:, 0:1] * tp[0:1, :]
    for b in range(1, nb):
        rep = rep + eb_ref[:, b:b + 1] * tp[b:b + 1, :]
    col = jnp.sum(rep * ec_ref[...], axis=1, keepdims=True)          # (R, 1)

    # --- heavy lane-dense pass: broadcast add + SiLU over the map tile ------
    y = x_ref[...].astype(jnp.float32) + col
    o_ref[...] = _silu(y).astype(o_ref.dtype)


# ------------------------------ wrapper -------------------------------------

def _pick_lane_tile(n_lanes, n_rows, itemsize, budget_bytes=4 << 20):
    """Largest lane tile: full extent if it fits the VMEM budget, else the
    largest 128-multiple divisor of n_lanes under the budget."""
    if n_lanes * n_rows * itemsize <= budget_bytes:
        return n_lanes
    max_t = max(128, budget_bytes // max(1, n_rows * itemsize))
    t = (max_t // 128) * 128
    while t >= 128:
        if n_lanes % t == 0:
            return t
        t -= 128
    return n_lanes  # no legal 128-multiple divisor -> full (unblocked) extent


@jax.jit
def time_mlp_forward(params, x_nchw, t):
    """TimeMLP.forward: silu(x + l2(silu(l1(t)))[:, :, None, None])."""
    B, C, H, W = x_nchw.shape
    R, N = B * C, H * W

    x2 = x_nchw.reshape(R, N)                       # lane-dense layout (free reshape)
    t = t.astype(jnp.float32)
    w1 = params["w1"].astype(jnp.float32)
    b1 = params["b1"].astype(jnp.float32).reshape(1, -1)
    w2 = params["w2"].astype(jnp.float32)
    b2 = params["b2"].astype(jnp.float32).reshape(1, -1)

    # One-hot row-selection matrices (built once, outside the kernel).
    rows = jnp.arange(R)
    e_b = (rows[:, None] // C == jnp.arange(B)[None, :]).astype(jnp.float32)  # (R, B)
    e_c = (rows[:, None] % C == jnp.arange(C)[None, :]).astype(jnp.float32)   # (R, C)

    tile_n = _pick_lane_tile(N, R, max(x2.dtype.itemsize, 4))
    grid = (pl.cdiv(N, tile_n),)

    def full_spec(a):
        return pl.BlockSpec(a.shape, lambda i: (0, 0))

    out = pl.pallas_call(
        _time_mlp_kernel,
        out_shape=jax.ShapeDtypeStruct((R, N), x_nchw.dtype),
        grid=grid,
        in_specs=[
            pl.BlockSpec((R, tile_n), lambda i: (0, i)),   # x spatial tile
            full_spec(t), full_spec(w1), full_spec(b1),
            full_spec(w2), full_spec(b2), full_spec(e_b), full_spec(e_c),
        ],
        out_specs=pl.BlockSpec((R, tile_n), lambda i: (0, i)),
        compiler_params=pltpu.CompilerParams(
            dimension_semantics=("parallel",)),            # v7x: both TCs usable
    )(x2, t, w1, b1, w2, b2, e_b, e_c)

    return out.reshape(B, C, H, W)


# --------------------------- pure-JAX reference ------------------------------

def time_mlp_ref(params, x, t):
    h = jax.nn.silu(t @ params["w1"] + params["b1"])
    tp = h @ params["w2"] + params["b2"]
    return jax.nn.silu(x + tp[:, :, None, None])


# --------------------------------- main --------------------------------------

if __name__ == "__main__":
    # TimeMLP(in_dim=32, hidden_dim=128, out_dim=8); x is the (B, out_dim, H, W)
    # feature map the time projection is broadcast onto.
    in_dim, hidden_dim, out_dim = 32, 128, 8
    B, H, W = 2, 16, 16

    key = jax.random.PRNGKey(0)
    kx, kt, k1, k2, k3, k4 = jax.random.split(key, 6)
    x = jax.random.normal(kx, (B, out_dim, H, W), jnp.float32)   # NCHW map
    t = jax.random.normal(kt, (B, in_dim), jnp.float32)          # time embedding

    params = {
        "w1": 0.1 * jax.random.normal(k1, (in_dim, hidden_dim), jnp.float32),
        "b1": 0.1 * jax.random.normal(k2, (hidden_dim,), jnp.float32),
        "w2": 0.1 * jax.random.normal(k3, (hidden_dim, out_dim), jnp.float32),
        "b2": 0.1 * jax.random.normal(k4, (out_dim,), jnp.float32),
    }

    out = jax.block_until_ready(time_mlp_forward(params, x, t))
    ref = time_mlp_ref(params=params, x=x, t=t)

    assert out.shape == x.shape, out.shape
    assert bool(jnp.all(jnp.isfinite(out)))
    max_err = float(jnp.max(jnp.abs(out - ref)))
    assert max_err < 1e-2, max_err
    print("KERNEL_OK")
</pallas_src>

<mosaic_0001>
module attributes {stable_mosaic.version = 11 : i64} {
  func.func @_time_mlp_kernel(%arg0: i32, %arg1: memref<16x256xf32, #tpu.memory_space<vmem>>, %arg2: memref<2x32xf32, #tpu.memory_space<vmem>>, %arg3: memref<32x128xf32, #tpu.memory_space<vmem>>, %arg4: memref<1x128xf32, #tpu.memory_space<vmem>>, %arg5: memref<128x8xf32, #tpu.memory_space<vmem>>, %arg6: memref<1x8xf32, #tpu.memory_space<vmem>>, %arg7: memref<16x2xf32, #tpu.memory_space<vmem>>, %arg8: memref<16x8xf32, #tpu.memory_space<vmem>>, %arg9: memref<16x256xf32, #tpu.memory_space<vmem>>) attributes {dimension_semantics = [#tpu.dimension_semantics<parallel>], iteration_bounds = array<i64: 1>, scalar_prefetch = 0 : i64, scratch_operands = 0 : i64, tpu.core_type = #tpu.core_type<tc>, window_params = [{transform_indices = @transform_0, window_bounds = array<i64: 16, 256>}, {pipeline_mode = #tpu.pipeline_mode<synchronous>, transform_indices = @transform_1, window_bounds = array<i64: 2, 32>}, {pipeline_mode = #tpu.pipeline_mode<synchronous>, transform_indices = @transform_2, window_bounds = array<i64: 32, 128>}, {pipeline_mode = #tpu.pipeline_mode<synchronous>, transform_indices = @transform_3, window_bounds = array<i64: 1, 128>}, {pipeline_mode = #tpu.pipeline_mode<synchronous>, transform_indices = @transform_4, window_bounds = array<i64: 128, 8>}, {pipeline_mode = #tpu.pipeline_mode<synchronous>, transform_indices = @transform_5, window_bounds = array<i64: 1, 8>}, {pipeline_mode = #tpu.pipeline_mode<synchronous>, transform_indices = @transform_6, window_bounds = array<i64: 16, 2>}, {pipeline_mode = #tpu.pipeline_mode<synchronous>, transform_indices = @transform_7, window_bounds = array<i64: 16, 8>}, {transform_indices = @transform_8, window_bounds = array<i64: 16, 256>}]} {
    %c0 = arith.constant 0 : index
    %c0_0 = arith.constant 0 : index
    %0 = vector.load %arg2[%c0, %c0_0] : memref<2x32xf32, #tpu.memory_space<vmem>>, vector<2x32xf32>
    %c0_1 = arith.constant 0 : index
    %c0_2 = arith.constant 0 : index
    %1 = vector.load %arg3[%c0_1, %c0_2] : memref<32x128xf32, #tpu.memory_space<vmem>>, vector<32x128xf32>
    %cst = arith.constant dense<0.000000e+00> : vector<2x128xf32>
    %2 = tpu.matmul %0, %1, %cst {dimension_numbers = #tpu.dot_dimension_numbers<[1], [0], [0], [1], [0, 0, 1, 1], [], []>} : vector<2x32xf32>, vector<32x128xf32>, vector<2x128xf32> -> vector<2x128xf32>
    %c0_3 = arith.constant 0 : index
    %c0_4 = arith.constant 0 : index
    %3 = vector.load %arg4[%c0_3, %c0_4] : memref<1x128xf32, #tpu.memory_space<vmem>>, vector<1x128xf32>
    %4 = vector.broadcast %3 : vector<1x128xf32> to vector<2x128xf32>
    %5 = arith.addf %2, %4 : vector<2x128xf32>
    %6 = arith.negf %5 : vector<2x128xf32>
    %7 = math.exp %6 : vector<2x128xf32>
    %cst_5 = arith.constant 1.000000e+00 : f32
    %8 = vector.broadcast %cst_5 : f32 to vector<2x128xf32>
    %9 = arith.addf %8, %7 : vector<2x128xf32>
    %10 = arith.divf %8, %9 : vector<2x128xf32>
    %11 = arith.mulf %5, %10 : vector<2x128xf32>
    %c0_6 = arith.constant 0 : index
    %c0_7 = arith.constant 0 : index
    %12 = vector.load %arg5[%c0_6, %c0_7] : memref<128x8xf32, #tpu.memory_space<vmem>>, vector<128x8xf32>
    %cst_8 = arith.constant dense<0.000000e+00> : vector<2x8xf32>
    %13 = tpu.matmul %11, %12, %cst_8 {dimension_numbers = #tpu.dot_dimension_numbers<[1], [0], [0], [1], [0, 0, 1, 1], [], []>} : vector<2x128xf32>, vector<128x8xf32>, vector<2x8xf32> -> vector<2x8xf32>
    %c0_9 = arith.constant 0 : index
    %c0_10 = arith.constant 0 : index
    %14 = vector.load %arg6[%c0_9, %c0_10] : memref<1x8xf32, #tpu.memory_space<vmem>>, vector<1x8xf32>
    %15 = vector.broadcast %14 : vector<1x8xf32> to vector<2x8xf32>
    %16 = arith.addf %13, %15 : vector<2x8xf32>
    %c0_11 = arith.constant 0 : index
    %c0_12 = arith.constant 0 : index
    %17 = vector.load %arg7[%c0_11, %c0_12] : memref<16x2xf32, #tpu.memory_space<vmem>>, vector<16x1xf32>
    %18 = vector.extract_strided_slice %16 {offsets = [0, 0], sizes = [1, 8], strides = [1, 1]} : vector<2x8xf32> to vector<1x8xf32>
    %19 = vector.broadcast %17 : vector<16x1xf32> to vector<16x8xf32>
    %20 = vector.broadcast %18 : vector<1x8xf32> to vector<16x8xf32>
    %21 = arith.mulf %19, %20 : vector<16x8xf32>
    %c0_13 = arith.constant 0 : index
    %c1 = arith.constant 1 : index
    %22 = vector.load %arg7[%c0_13, %c1] : memref<16x2xf32, #tpu.memory_space<vmem>>, vector<16x1xf32>
    %23 = vector.extract_strided_slice %16 {offsets = [1, 0], sizes = [1, 8], strides = [1, 1]} : vector<2x8xf32> to vector<1x8xf32>
    %24 = vector.broadcast %22 : vector<16x1xf32> to vector<16x8xf32>
    %25 = vector.broadcast %23 : vector<1x8xf32> to vector<16x8xf32>
    %26 = arith.mulf %24, %25 : vector<16x8xf32>
    %27 = arith.addf %21, %26 : vector<16x8xf32>
    %c0_14 = arith.constant 0 : index
    %c0_15 = arith.constant 0 : index
    %28 = vector.load %arg8[%c0_14, %c0_15] : memref<16x8xf32, #tpu.memory_space<vmem>>, vector<16x8xf32>
    %29 = arith.mulf %27, %28 : vector<16x8xf32>
    %cst_16 = arith.constant dense<0.000000e+00> : vector<16xf32>
    %30 = vector.multi_reduction <add>, %29, %cst_16 [1] : vector<16x8xf32> to vector<16xf32>
    %31 = vector.shape_cast %30 : vector<16xf32> to vector<16x1xf32>
    %c0_17 = arith.constant 0 : index
    %c0_18 = arith.constant 0 : index
    %32 = vector.load %arg1[%c0_17, %c0_18] : memref<16x256xf32, #tpu.memory_space<vmem>>, vector<16x256xf32>
    %33 = vector.broadcast %31 : vector<16x1xf32> to vector<16x256xf32>
    %34 = arith.addf %32, %33 : vector<16x256xf32>
    %35 = arith.negf %34 : vector<16x256xf32>
    %36 = math.exp %35 : vector<16x256xf32>
    %cst_19 = arith.constant 1.000000e+00 : f32
    %37 = vector.broadcast %cst_19 : f32 to vector<16x256xf32>
    %38 = arith.addf %37, %36 : vector<16x256xf32>
    %39 = arith.divf %37, %38 : vector<16x256xf32>
    %40 = arith.mulf %34, %39 : vector<16x256xf32>
    %c0_20 = arith.constant 0 : index
    %c0_21 = arith.constant 0 : index
    %41 = vector.load %arg9[%c0_20, %c0_21] : memref<16x256xf32, #tpu.memory_space<vmem>>, vector<16x256xf32>
    tpu.vector_store %arg9[%c0_20, %c0_21], %40 {strides = array<i32>} : memref<16x256xf32, #tpu.memory_space<vmem>>, vector<16x256xf32>,
    return
  }
  func.func @transform_0(%arg0: i32) -> (i32, i32) {
    %c0_i32 = arith.constant 0 : i32
    %c0_i32_0 = arith.constant 0 : i32
    return %c0_i32, %arg0 : i32, i32
  }
  func.func @transform_1(%arg0: i32) -> (i32, i32) {
    %c0_i32 = arith.constant 0 : i32
    %c0_i32_0 = arith.constant 0 : i32
    %c0_i32_1 = arith.constant 0 : i32
    return %c0_i32, %c0_i32_0 : i32, i32
  }
  func.func @transform_2(%arg0: i32) -> (i32, i32) {
    %c0_i32 = arith.constant 0 : i32
    %c0_i32_0 = arith.constant 0 : i32
    %c0_i32_1 = arith.constant 0 : i32
    return %c0_i32, %c0_i32_0 : i32, i32
  }
  func.func @transform_3(%arg0: i32) -> (i32, i32) {
    %c0_i32 = arith.constant 0 : i32
    %c0_i32_0 = arith.constant 0 : i32
    %c0_i32_1 = arith.constant 0 : i32
    return %c0_i32, %c0_i32_0 : i32, i32
  }
  func.func @transform_4(%arg0: i32) -> (i32, i32) {
    %c0_i32 = arith.constant 0 : i32
    %c0_i32_0 = arith.constant 0 : i32
    %c0_i32_1 = arith.constant 0 : i32
    return %c0_i32, %c0_i32_0 : i32, i32
  }
  func.func @transform_5(%arg0: i32) -> (i32, i32) {
    %c0_i32 = arith.constant 0 : i32
    %c0_i32_0 = arith.constant 0 : i32
    %c0_i32_1 = arith.constant 0 : i32
    return %c0_i32, %c0_i32_0 : i32, i32
  }
  func.func @transform_6(%arg0: i32) -> (i32, i32) {
    %c0_i32 = arith.constant 0 : i32
    %c0_i32_0 = arith.constant 0 : i32
    %c0_i32_1 = arith.constant 0 : i32
    return %c0_i32, %c0_i32_0 : i32, i32
  }
  func.func @transform_7(%arg0: i32) -> (i32, i32) {
    %c0_i32 = arith.constant 0 : i32
    %c0_i32_0 = arith.constant 0 : i32
    %c0_i32_1 = arith.constant 0 : i32
    return %c0_i32, %c0_i32_0 : i32, i32
  }
  func.func @transform_8(%arg0: i32) -> (i32, i32) {
    %c0_i32 = arith.constant 0 : i32
    %c0_i32_0 = arith.constant 0 : i32
    return %c0_i32, %arg0 : i32, i32
  }
}

</mosaic_0001>

<llo_original>
// kernel: time_mlp_forward.1
$region0: #{time_mlp_forward.1}
  #allocation0 [shape = 'u32[]', space=smem, size = 0x4, offset = 0x4, fixed_abs, tag = 'smem constant byte address 0x4 - core index']
  #allocation1 [shape = 'u32[144,128]{1,0:T(1,128)}', space=vmem, size = 0x12000, scoped, tag = 'internal scratch']
  %s0 = inlined_call_operand.vmem [shape: f32[16,256], index: 0, kind: input, shape index: {}]
  %s1 = inlined_call_operand.vmem [shape: f32[2,32], index: 1, kind: input, shape index: {}]
  %s2 = inlined_call_operand.vmem [shape: f32[32,128], index: 2, kind: input, shape index: {}]
  %s3 = inlined_call_operand.vmem [shape: f32[1,128], index: 3, kind: input, shape index: {}]
  %s4 = inlined_call_operand.vmem [shape: f32[128,8], index: 4, kind: input, shape index: {}]
  %s5 = inlined_call_operand.vmem [shape: f32[1,8], index: 5, kind: input, shape index: {}]
  %s6 = inlined_call_operand.vmem [shape: f32[16,2], index: 6, kind: input, shape index: {}]
  %s7 = inlined_call_operand.vmem [shape: f32[16,8], index: 7, kind: input, shape index: {}]
  %s8 = inlined_call_operand.vmem [shape: f32[16,256], index: 8, kind: output, shape index: {}]
  %s9 = sld [smem:[#allocation0]]
  $region42: #{time_mlp_forward.1} parent=0
    _
  %s11 = ssub.s32 1, %s9
  %s12 = scalar_select 0, %s11, %s9
  // Predicated region
  $region2: #{time_mlp_forward.1} parent=0 // pred_check
    _
  $region3: #{time_mlp_forward.1} parent=0 // pred_check_branch
    %14 = sbr.rel (0) target = $region5
  $region4: #{time_mlp_forward.1} parent=0 // pred_region
    _
  $region5: #{time_mlp_forward.1} parent=0 // pred_fallthru
    _
  // Predicated region
  $region6: #{time_mlp_forward.1} parent=0 // pred_check
    _
  $region7: #{time_mlp_forward.1} parent=0 // pred_check_branch
    %16 = sbr.rel (0) target = $region9
  $region8: #{time_mlp_forward.1} parent=0 // pred_region
    _
  $region9: #{time_mlp_forward.1} parent=0 // pred_fallthru
    _
  // Predicated region
  $region10: #{time_mlp_forward.1} parent=0 // pred_check
    _
  $region11: #{time_mlp_forward.1} parent=0 // pred_check_branch
    %18 = sbr.rel (0) target = $region13
  $region12: #{time_mlp_forward.1} parent=0 // pred_region
    _
  $region13: #{time_mlp_forward.1} parent=0 // pred_fallthru
    _
  // Predicated region
  $region14: #{time_mlp_forward.1} parent=0 // pred_check
    _
  $region15: #{time_mlp_forward.1} parent=0 // pred_check_branch
    %20 = sbr.rel (0) target = $region17
  $region16: #{time_mlp_forward.1} parent=0 // pred_region
    _
  $region17: #{time_mlp_forward.1} parent=0 // pred_fallthru
    _
  // Predicated region
  $region18: #{time_mlp_forward.1} parent=0 // pred_check
    _
  $region19: #{time_mlp_forward.1} parent=0 // pred_check_branch
    %22 = sbr.rel (0) target = $region21
  $region20: #{time_mlp_forward.1} parent=0 // pred_region
    _
  $region21: #{time_mlp_forward.1} parent=0 // pred_fallthru
    _
  // Predicated region
  $region22: #{time_mlp_forward.1} parent=0 // pred_check
    _
  $region23: #{time_mlp_forward.1} parent=0 // pred_check_branch
    %24 = sbr.rel (0) target = $region25
  $region24: #{time_mlp_forward.1} parent=0 // pred_region
    _
  $region25: #{time_mlp_forward.1} parent=0 // pred_fallthru
    _
  // Predicated region
  $region26: #{time_mlp_forward.1} parent=0 // pred_check
    _
  $region27: #{time_mlp_forward.1} parent=0 // pred_check_branch
    %26 = sbr.rel (0) target = $region29
  $region28: #{time_mlp_forward.1} parent=0 // pred_region
    _
  $region29: #{time_mlp_forward.1} parent=0 // pred_fallthru
    _
  // Predicated region
  $region30: #{time_mlp_forward.1} parent=0 // pred_check
    _
  $region31: #{time_mlp_forward.1} parent=0 // pred_check_branch
    %28 = sbr.rel (0) target = $region33
  $region32: #{time_mlp_forward.1} parent=0 // pred_region
    _
  $region33: #{time_mlp_forward.1} parent=0 // pred_fallthru
    _
  %v29 = vld [vmem:[%s1] sm:$0x3]
  %v30 = vld [vmem:[%s2] sm:$0xff]
  %v31 = vld [vmem:[%s2 + $0x8] sm:$0xff]
  %v32 = vld [vmem:[%s2 + $0x10] sm:$0xff]
  %v33 = vld [vmem:[%s2 + $0x18] sm:$0xff]
  %v34 = vld [vmem:[%s3] sm:$0x1]
  %v36 = vlaneseq
  %v37 = vshrl.u32 %v36, 7
  %v38 = vsub.s32 0, %v37
  %v39 = vrot.slane %v34, %v38
  %vm41 = vcmask 261120
  %v43 = vsel %vm41, %v29, 0
  %45 = vmatprep.subr.mxu0 0.0
  %46 = vmatpush1.msra.mxu0 0.0
  %47 = vmatprep.subr.mxu0 0.0
  %48 = vmatpush1.msra.mxu0 0.0
  %49 = vmatprep.subr.mxu0 0.0
  %50 = vmatpush1.msra.mxu0 0.0
  %51 = vmatprep.subr.mxu0 0.0
  %52 = vmatpush1.msra.mxu0 0.0
  %53 = vmatprep.subr.mxu0 0.0
  %54 = vmatpush1.msra.mxu0 0.0
  %55 = vmatprep.subr.mxu0 0.0
  %56 = vmatpush1.msra.mxu0 0.0
  %57 = vmatprep.subr.mxu0 0.0
  %58 = vmatpush1.msra.mxu0 0.0
  %59 = vmatprep.subr.mxu0 0.0
  %60 = vmatpush1.msra.mxu0 0.0
  %61 = vmatprep.subr.mxu0 0.0
  %62 = vmatpush1.msra.mxu0 0.0
  %63 = vmatprep.subr.mxu0 0.0
  %64 = vmatpush1.msra.mxu0 0.0
  %65 = vmatprep.subr.mxu0 0.0
  %66 = vmatpush1.msra.mxu0 0.0
  %67 = vmatprep.subr.mxu0 0.0
  %68 = vmatpush1.msra.mxu0 0.0
  %69 = vmatprep.subr.mxu0 0.0
  %70 = vmatpush1.msra.mxu0 %v33
  %71 = vmatprep.subr.mxu0 0.0
  %72 = vmatpush1.msra.mxu0 %v32
  %73 = vmatprep.subr.mxu0 0.0
  %74 = vmatpush1.msra.mxu0 %v31
  %75 = vmatprep.subr.mxu0 0.0
  %76 = vmatpush1.msra.mxu0 %v30
  %77 = vmatprep.subr.mxu0 0.0
  %78 = vmatpush2.msra.mxu0 0.0
  %79 = vmatprep.subr.mxu0 0.0
  %80 = vmatpush2.msra.mxu0 0.0
  %81 = vmatprep.subr.mxu0 0.0
  %82 = vmatpush2.msra.mxu0 0.0
  %83 = vmatprep.subr.mxu0 0.0
  %84 = vmatpush2.msra.mxu0 0.0
  %85 = vmatprep.subr.mxu0 0.0
  %86 = vmatpush2.msra.mxu0 0.0
  %87 = vmatprep.subr.mxu0 0.0
  %88 = vmatpush2.msra.mxu0 0.0
  %89 = vmatprep.subr.mxu0 0.0
  %90 = vmatpush2.msra.mxu0 0.0
  %91 = vmatprep.subr.mxu0 0.0
  %92 = vmatpush2.msra.mxu0 0.0
  %93 = vmatprep.subr.mxu0 0.0
  %94 = vmatpush2.msra.mxu0 0.0
  %95 = vmatprep.subr.mxu0 0.0
  %96 = vmatpush2.msra.mxu0 0.0
  %97 = vmatprep.subr.mxu0 0.0
  %98 = vmatpush2.msra.mxu0 0.0
  %99 = vmatprep.subr.mxu0 0.0
  %100 = vmatpush2.msra.mxu0 0.0
  %101 = vmatprep.subr.mxu0 0.0
  %102 = vmatpush2.msra.mxu0 0.0
  %103 = vmatprep.subr.mxu0 0.0
  %104 = vmatpush2.msra.mxu0 0.0
  %105 = vmatprep.subr.mxu0 0.0
  %106 = vmatpush2.msra.mxu0 0.0
  %107 = vmatprep.subr.mxu0 0.0
  %108 = vmatpush2.msra.mxu0 0.0
  %109 = vmatprep.mubr.f32.mxu0 0.0
  %110 = vmatmul.mubr.f32.gmra.mxu0 %v43
  %v111 = vpop.f32.mrf.mxu0
  %v112 = vadd.f32 %v39, %v111
  %v113 = vpop.f32.mrf.mxu0
  %114 = vdwg.mxu0
  %v115 = vxor.u32 %v112, 2147483648
  %v116 = vmul.f32 %v115, 1.442695
  %v117 = vpow.pop %v116
  %v118 = vadd.f32 %v117, 1.0
  %v119 = vrcp.pop %v118
  %v120 = vmul.f32 1.0, %v119
  %v121 = vmul.f32 %v112, %v120
  %v122 = vld [vmem:[%s4] sm:$0xff]
  %v123 = vld [vmem:[%s4 + $0x8] sm:$0xff]
  %v124 = vld [vmem:[%s4 + $0x10] sm:$0xff]
  %v125 = vld [vmem:[%s4 + $0x18] sm:$0xff]
  %v126 = vld [vmem:[%s4 + $0x20] sm:$0xff]
  %v127 = vld [vmem:[%s4 + $0x28] sm:$0xff]
  %v128 = vld [vmem:[%s4 + $0x30] sm:$0xff]
  %v129 = vld [vmem:[%s4 + $0x38] sm:$0xff]
  %v130 = vld [vmem:[%s4 + $0x40] sm:$0xff]
  %v131 = vld [vmem:[%s4 + $0x48] sm:$0xff]
  %v132 = vld [vmem:[%s4 + $0x50] sm:$0xff]
  %v133 = vld [vmem:[%s4 + $0x58] sm:$0xff]
  %v134 = vld [vmem:[%s4 + $0x60] sm:$0xff]
  %v135 = vld [vmem:[%s4 + $0x68] sm:$0xff]
  %v136 = vld [vmem:[%s4 + $0x70] sm:$0xff]
  %v137 = vld [vmem:[%s4 + $0x78] sm:$0xff]
  %v138 = vld [vmem:[%s5] sm:$0x1]
  %v140 = vlaneseq
  %v141 = vshrl.u32 %v140, 7
  %v142 = vsub.s32 0, %v141
  %v143 = vrot.slane %v138, %v142
  %145 = vmatprep.subr.mxu0 0.0
  %146 = vmatpush1.msra.mxu0 %v137
  %147 = vmatprep.subr.mxu0 0.0
  %148 = vmatpush1.msra.mxu0 %v136
  %149 = vmatprep.subr.mxu0 0.0
  %150 = vmatpush1.msra.mxu0 %v135
  %151 = vmatprep.subr.mxu0 0.0
  %152 = vmatpush1.msra.mxu0 %v134
  %153 = vmatprep.subr.mxu0 0.0
  %154 = vmatpush1.msra.mxu0 %v133
  %155 = vmatprep.subr.mxu0 0.0
  %156 = vmatpush1.msra.mxu0 %v132
  %157 = vmatprep.subr.mxu0 0.0
  %158 = vmatpush1.msra.mxu0 %v131
  %159 = vmatprep.subr.mxu0 0.0
  %160 = vmatpush1.msra.mxu0 %v130
  %161 = vmatprep.subr.mxu0 0.0
  %162 = vmatpush1.msra.mxu0 %v129
  %163 = vmatprep.subr.mxu0 0.0
  %164 = vmatpush1.msra.mxu0 %v128
  %165 = vmatprep.subr.mxu0 0.0
  %166 = vmatpush1.msra.mxu0 %v127
  %167 = vmatprep.subr.mxu0 0.0
  %168 = vmatpush1.msra.mxu0 %v126
  %169 = vmatprep.subr.mxu0 0.0
  %170 = vmatpush1.msra.mxu0 %v125
  %171 = vmatprep.subr.mxu0 0.0
  %172 = vmatpush1.msra.mxu0 %v124
  %173 = vmatprep.subr.mxu0 0.0
  %174 = vmatpush1.msra.mxu0 %v123
  %175 = vmatprep.subr.mxu0 0.0
  %176 = vmatpush1.msra.mxu0 %v122
  %177 = vmatprep.subr.mxu0 0.0
  %178 = vmatpush2.msra.mxu0 0.0
  %179 = vmatprep.subr.mxu0 0.0
  %180 = vmatpush2.msra.mxu0 0.0
  %181 = vmatprep.subr.mxu0 0.0
  %182 = vmatpush2.msra.mxu0 0.0
  %183 = vmatprep.subr.mxu0 0.0
  %184 = vmatpush2.msra.mxu0 0.0
  %185 = vmatprep.subr.mxu0 0.0
  %186 = vmatpush2.msra.mxu0 0.0
  %187 = vmatprep.subr.mxu0 0.0
  %188 = vmatpush2.msra.mxu0 0.0
  %189 = vmatprep.subr.mxu0 0.0
  %190 = vmatpush2.msra.mxu0 0.0
  %191 = vmatprep.subr.mxu0 0.0
  %192 = vmatpush2.msra.mxu0 0.0
  %193 = vmatprep.subr.mxu0 0.0
  %194 = vmatpush2.msra.mxu0 0.0
  %195 = vmatprep.subr.mxu0 0.0
  %196 = vmatpush2.msra.mxu0 0.0
  %197 = vmatprep.subr.mxu0 0.0
  %198 = vmatpush2.msra.mxu0 0.0
  %199 = vmatprep.subr.mxu0 0.0
  %200 = vmatpush2.msra.mxu0 0.0
  %201 = vmatprep.subr.mxu0 0.0
  %202 = vmatpush2.msra.mxu0 0.0
  %203 = vmatprep.subr.mxu0 0.0
  %204 = vmatpush2.msra.mxu0 0.0
  %205 = vmatprep.subr.mxu0 0.0
  %206 = vmatpush2.msra.mxu0 0.0
  %207 = vmatprep.subr.mxu0 0.0
  %208 = vmatpush2.msra.mxu0 0.0
  %209 = vmatprep.mubr.f32.mxu0 0.0
  %210 = vmatmul.mubr.f32.gmra.mxu0 %v121
  %v211 = vpop.f32.mrf.mxu0
  %v212 = vadd.f32 %v143, %v211
  %v213 = vpop.f32.mrf.mxu0
  %214 = vdwg.mxu0
  %v215 = vld [vmem:[%s6] sm:$0xff]
  %v216 = vld [vmem:[%s6 + $0x8] sm:$0xff]
  %218 = vset.pattern.permute.xlu0 0
  %219 = vperm.xlu0 %218, %v215
  %v220 = vpop.permute.xlu0 %219
  %223 = vset.pattern.permute.xlu0 0
  %224 = vperm.xlu0 %223, %v216
  %v225 = vpop.permute.xlu0 %224
  %v227 = vlaneseq
  %v228 = vshrl.u32 %v227, 7
  %v229 = vsub.s32 0, %v228
  %v230 = vrot.slane %v212, %v229
  %v231 = vmul.f32 %v220, %v230
  %v232 = vmul.f32 %v225, %v230
  %233 = vset.pattern.permute.xlu0 1
  %234 = vperm.xlu0 %233, %v215
  %v235 = vpop.permute.xlu0 %234
  %237 = vset.pattern.permute.xlu0 1
  %238 = vperm.xlu0 %237, %v216
  %v239 = vpop.permute.xlu0 %238
  %v241 = vlaneseq
  %v242 = vshrl.u32 %v241, 7
  %v243 = vsub.s32 1, %v242
  %v244 = vrot.slane %v212, %v243
  %v245 = vmul.f32 %v235, %v244
  %v246 = vmul.f32 %v239, %v244
  %v247 = vadd.f32 %v231, %v245
  %v248 = vadd.f32 %v232, %v246
  %v249 = vld [vmem:[%s7] sm:$0xff]
  %v250 = vld [vmem:[%s7 + $0x8] sm:$0xff]
  %v251 = vmul.f32 %v247, %v249
  %v252 = vmul.f32 %v248, %v250
  %vm253 = vcmask 64512
  %v254 = vsel %vm253, %v251, 0.0
  %255 = vadd.xlane.f32.xlu0 %v254
  %v256 = vpop.xlane.xlu0 %255
  %v257 = vsel %vm253, %v252, 0.0
  %258 = vadd.xlane.f32.xlu0 %v257
  %v259 = vpop.xlane.xlu0 %258
  %v260 = vld [vmem:[%s0] sm:$0xff]
  %v261 = vld [vmem:[%s0 + $0x8] sm:$0xff]
  %v262 = vld [vmem:[%s0 + $0x10] sm:$0xff]
  %v263 = vld [vmem:[%s0 + $0x18] sm:$0xff]
  %v264 = vadd.f32 %v260, %v256
  %v265 = vadd.f32 %v261, %v256
  %v266 = vadd.f32 %v262, %v259
  %v267 = vadd.f32 %v263, %v259
  %v268 = vxor.u32 %v264, 2147483648
  %v269 = vxor.u32 %v265, 2147483648
  %v270 = vxor.u32 %v266, 2147483648
  %v271 = vxor.u32 %v267, 2147483648
  %v272 = vmul.f32 %v268, 1.442695
  %v273 = vpow.pop %v272
  %v274 = vmul.f32 %v269, 1.442695
  %v275 = vpow.pop %v274
  %v276 = vmul.f32 %v270, 1.442695
  %v277 = vpow.pop %v276
  %v278 = vmul.f32 %v271, 1.442695
  %v279 = vpow.pop %v278
  %v280 = vadd.f32 %v273, 1.0
  %v281 = vadd.f32 %v275, 1.0
  %v282 = vadd.f32 %v277, 1.0
  %v283 = vadd.f32 %v279, 1.0
  %v284 = vrcp.pop %v280
  %v285 = vmul.f32 1.0, %v284
  %v286 = vrcp.pop %v281
  %v287 = vmul.f32 1.0, %v286
  %v288 = vrcp.pop %v282
  %v289 = vmul.f32 1.0, %v288
  %v290 = vrcp.pop %v283
  %v291 = vmul.f32 1.0, %v290
  %v292 = vmul.f32 %v264, %v285
  %v293 = vmul.f32 %v265, %v287
  %v294 = vmul.f32 %v266, %v289
  %v295 = vmul.f32 %v267, %v291
  %296 = vst [vmem:[%s8] sm:$0xff] %v292
  %297 = vst [vmem:[%s8 + $0x8] sm:$0xff] %v293
  %298 = vst [vmem:[%s8 + $0x10] sm:$0xff] %v294
  %299 = vst [vmem:[%s8 + $0x18] sm:$0xff] %v295
  // Predicated region
  $region34: #{time_mlp_forward.1} parent=0 // pred_check
    _
  $region35: #{time_mlp_forward.1} parent=0 // pred_check_branch
    %301 = sbr.rel (0) target = $region37
  $region36: #{time_mlp_forward.1} parent=0 // pred_region
    _
  $region37: #{time_mlp_forward.1} parent=0 // pred_fallthru
    _
  // Predicated region
  $region38: #{time_mlp_forward.1} parent=0 // pred_check
    _
  $region39: #{time_mlp_forward.1} parent=0 // pred_check_branch
    %303 = sbr.rel (0) target = $region41
  $region40: #{time_mlp_forward.1} parent=0 // pred_region
    _
  $region41: #{time_mlp_forward.1} parent=0 // pred_fallthru
    _

</llo_original>
